<compile_context>
chip_gen: v7x
topology: tpu7x:2x2x1
jax: 0.10.0
libtpu: 0.0.40
codegen_flags: <defaults>
</compile_context>

<pallas_src>
import functools
import math

import jax
import jax.numpy as jnp
from jax.experimental import pallas as pl
from jax.experimental.pallas import tpu as pltpu

# ---- hyper-parameters (module __init__ defaults) --------------------------
EPS = 1e-6
BG_WEIGHT = 1.0
GMM_WEIGHT = 1.0
MIN_SIGMA = 0.01
MAX_SIGMA = 10.0
USE_LOG_SIGMA = True          # module default
UNCERTAINTY_WEIGHT = 0.1
TEMPERATURE_INIT = 1.0        # registered buffer, deterministic init
LOG_2PI_HALF = 0.5 * math.log(2.0 * math.pi)

# Channel layout of the packed output slab.
_TOTAL_CH = slice(0, 4)
_GMM_CH = slice(4, 5)
_BG_CH = slice(5, 6)
_UNC_CH = slice(6, 10)


def _loss_kernel(out_ref, tgt_ref, packed_ref, sums_ref, *,
                 hw, block_ts, inv_temp, needs_mask):
    """One (TB, 10, TS) block of the elementwise loss + masked partial sums.

    out_ref/tgt_ref: (TB, 10, TS) VMEM tiles of model output / target.
    packed_ref:      (TB, 10, TS) VMEM tile -> ch 0-3 total, 4 gmm, 5 bg, 6-9 unc.
    sums_ref:        (1, 3, 128) VMEM -> rows = [sum(gmm), sum(bg), sum(unc)],
                     each broadcast across the 128 lanes (lane 0 is read back).
    """
    f32 = jnp.float32

    # ---- channel 0: detection BCE via log-sigmoid identities ----
    #   log sigma(p)      = min(p, 0) - log1p(exp(-|p|))
    #   log(1 - sigma(p)) = -max(p, 0) - log1p(exp(-|p|))
    # F.binary_cross_entropy clamps log terms at -100.
    p = out_ref[:, 0:1, :].astype(f32)                    # (TB, 1, TS) logits
    if inv_temp != 1.0:                                   # compile-time constant
        p = p * inv_temp
    tp = tgt_ref[:, 0:1, :].astype(f32)
    softplus_nabs = jnp.log1p(jnp.exp(-jnp.abs(p)))
    log_ps = jnp.maximum(jnp.minimum(p, 0.0) - softplus_nabs, -100.0)
    log_1mps = jnp.maximum(-jnp.maximum(p, 0.0) - softplus_nabs, -100.0)
    detection_loss = -(tp * log_ps + (1.0 - tp) * log_1mps)   # (TB, 1, TS)
    fg_mask = (tp > 0.5).astype(f32)                          # (TB, 1, TS)

    # ---- channels 1-4 (mu) / 5-8 (log-sigma): Gaussian NLL ----
    mu = out_ref[:, 1:5, :].astype(f32)                       # (TB, 4, TS)
    tmu = tgt_ref[:, 1:5, :].astype(f32)                      # (TB, 4, TS)
    # use_log_sigma=True -> exp, then clamp
    sig = jnp.clip(jnp.exp(out_ref[:, 5:9, :].astype(f32)),
                   MIN_SIGMA, MAX_SIGMA)                      # (TB, 4, TS)
    nd = (mu - tmu) / (sig + EPS)
    nll_ch = 0.5 * nd * nd + jnp.log(sig + EPS) + LOG_2PI_HALF  # (TB, 4, TS)
    # Unrolled channel reduction: plain vreg adds instead of a cross-sublane sum.
    nll = (nll_ch[:, 0:1, :] + nll_ch[:, 1:2, :]
           + nll_ch[:, 2:3, :] + nll_ch[:, 3:4, :])             # (TB, 1, TS)
    gmm_loss = detection_loss + nll * fg_mask                   # (TB, 1, TS)

    # ---- channel 9: background MSE (reduction='none') ----
    bg = out_ref[:, 9:10, :].astype(f32)
    tbg = tgt_ref[:, 9:10, :].astype(f32)
    bg_loss = (bg - tbg) ** 2                                   # (TB, 1, TS)

    # ---- base total (what GaussianMMLoss returns) ----
    base_total = GMM_WEIGHT * gmm_loss + BG_WEIGHT * bg_loss    # (TB, 1, TS)

    # ---- uncertainty loss: MSE(pxyz_sig, 0.5), elementwise ----
    unc_loss = (sig - 0.5) ** 2                                 # (TB, 4, TS)

    # Adaptive total: (B,1,H,W) + w * (B,4,H,W) broadcasts to (B,4,H,W)
    total = base_total + UNCERTAINTY_WEIGHT * unc_loss          # (TB, 4, TS)

    # ---- packed output slab (grouped, lane-dense stores) ----
    odt = packed_ref.dtype
    packed_ref[:, _TOTAL_CH, :] = total.astype(odt)
    packed_ref[:, _GMM_CH, :] = gmm_loss.astype(odt)
    packed_ref[:, _BG_CH, :] = bg_loss.astype(odt)
    packed_ref[:, _UNC_CH, :] = unc_loss.astype(odt)

    # ---- fused (masked) partial sums for the mean losses ----
    if needs_mask:
        # Padded lanes of the partial edge block carry garbage -> mask them.
        lane = jax.lax.broadcasted_iota(jnp.int32, (1, 1, block_ts), 2)
        valid = hw - pl.program_id(1) * block_ts
        m = lane < valid
        g_s = jnp.sum(jnp.where(m, gmm_loss, 0.0))
        b_s = jnp.sum(jnp.where(m, bg_loss, 0.0))
        u_s = jnp.sum(jnp.where(m, unc_loss, 0.0))
    else:
        g_s = jnp.sum(gmm_loss)
        b_s = jnp.sum(bg_loss)
        u_s = jnp.sum(unc_loss)
    sums_ref[:, 0:1, :] = jnp.full((1, 1, 128), g_s, f32)
    sums_ref[:, 1:2, :] = jnp.full((1, 1, 128), b_s, f32)
    sums_ref[:, 2:3, :] = jnp.full((1, 1, 128), u_s, f32)


def _pick_tiles(B, HW, target_elems=32768):
    """Choose (TB, GB, TS, GS).

    TS is the full spatial extent when small, otherwise a fixed 128-multiple
    tile with a (masked) partial edge block.  TB always divides B.  The block
    is sized so the double-buffered 3-stream footprint stays ~12.6 MiB (f32).
    """
    if HW > target_elems:
        TS = target_elems                       # 128-multiple by construction
    else:
        TS = HW                                 # full extent in one block
    GS = -(-HW // TS)

    cap = max(1, target_elems // TS)
    TB = max(d for d in range(1, min(B, cap) + 1) if B % d == 0)
    GB = B // TB

    # Guarantee >= 2 grid blocks when cheaply possible (v7x has 2 TensorCores).
    if GB * GS < 2:
        if B >= 2:
            TB = max(d for d in range(1, B) if B % d == 0)  # largest proper divisor
            GB = B // TB
        elif TS >= 256 and TS % 256 == 0:
            TS //= 2
            GS = -(-HW // TS)
    return TB, GB, TS, GS


def adaptive_gaussian_mm_loss(output, target, temperature=TEMPERATURE_INIT,
                              block_elems=32768):
    """output, target: (B, 10, H, W) -> dict of losses.

    Loss maps are returned in the input dtype; mean losses in float32.
    """
    B, C, H, W = output.shape
    assert C == 10, "AdaptiveGaussianMMLoss expects 10-channel input"
    assert target.shape[1] == 10, "only the 10-channel target branch is implemented"
    HW = H * W

    out_flat = output.reshape(B, C, HW)            # keep native dtype
    tgt_flat = target.reshape(B, C, HW)

    TB, GB, TS, GS = _pick_tiles(B, HW, block_elems)
    needs_mask = (HW % TS) != 0
    n_steps = GB * GS

    kern = functools.partial(
        _loss_kernel,
        hw=HW, block_ts=TS,
        inv_temp=1.0 / float(temperature),
        needs_mask=needs_mask,
    )

    packed, part_sums = pl.pallas_call(
        kern,
        out_shape=(
            jax.ShapeDtypeStruct((B, C, HW), output.dtype),     # packed loss slab
            jax.ShapeDtypeStruct((n_steps, 3, 128), jnp.float32),  # per-block sums
        ),
        grid=(GB, GS),
        in_specs=[
            pl.BlockSpec((TB, C, TS), lambda b, s: (b, 0, s)),  # model output
            pl.BlockSpec((TB, C, TS), lambda b, s: (b, 0, s)),  # target
        ],
        out_specs=(
            pl.BlockSpec((TB, C, TS), lambda b, s: (b, 0, s)),
            pl.BlockSpec((1, 3, 128), lambda b, s: (b * GS + s, 0, 0)),
        ),
        compiler_params=pltpu.CompilerParams(
            dimension_semantics=("parallel", "parallel"),
            vmem_limit_bytes=32 * 1024 * 1024),
    )(out_flat, tgt_flat)

    # Slice the packed slab back into the PyTorch-shaped loss maps.
    total_loss = packed[:, _TOTAL_CH].reshape(B, 4, H, W)
    gmm_loss = packed[:, _GMM_CH].reshape(B, 1, H, W)
    bg_loss = packed[:, _BG_CH].reshape(B, 1, H, W)
    unc_loss = packed[:, _UNC_CH].reshape(B, 4, H, W)

    # Finalize fused reductions (tiny (n_steps, 3) read of lane 0).
    sums = jnp.sum(part_sums[:, :, 0].astype(jnp.float32), axis=0)   # (3,)
    n_map = float(B * HW)
    mean_gmm = sums[0] / n_map
    mean_bg = sums[1] / n_map
    mean_unc = sums[2] / (4.0 * n_map)
    # 'mean_total_loss' in the PyTorch module is the mean of the BASE total
    # (gmm + bg, before the uncertainty term is broadcast-added).
    mean_total = (GMM_WEIGHT * sums[0] + BG_WEIGHT * sums[1]) / n_map

    return {
        "total_loss": total_loss,
        "gmm_loss": gmm_loss,
        "bg_loss": bg_loss,
        "uncertainty_loss": unc_loss,
        "mean_total_loss": mean_total,
        "mean_gmm_loss": mean_gmm,
        "mean_bg_loss": mean_bg,
        "mean_uncertainty_loss": mean_unc,
    }


# ---------------------------------------------------------------------------
# Pure-JAX reference (mirrors the PyTorch math) for a correctness check.
# ---------------------------------------------------------------------------
def _reference(output, target, temperature=TEMPERATURE_INIT):
    p = output[:, 0:1] / temperature
    mu = output[:, 1:5]
    sig = jnp.clip(jnp.exp(output[:, 5:9]), MIN_SIGMA, MAX_SIGMA)
    bg = output[:, 9:10]
    tp = target[:, 0:1]
    tmu = target[:, 1:5]
    tbg = target[:, 9:10]

    fg = (tp > 0.5).astype(jnp.float32)
    ps = jax.nn.sigmoid(p)
    det = -(tp * jnp.maximum(jnp.log(ps), -100.0)
            + (1.0 - tp) * jnp.maximum(jnp.log(1.0 - ps), -100.0))
    nd = (mu - tmu) / (sig + EPS)
    nll = jnp.sum(0.5 * nd * nd + jnp.log(sig + EPS) + LOG_2PI_HALF,
                  axis=1, keepdims=True)
    gmm = det + nll * fg
    bgl = (bg - tbg) ** 2
    base = GMM_WEIGHT * gmm + BG_WEIGHT * bgl
    unc = (sig - 0.5) ** 2
    total = base + UNCERTAINTY_WEIGHT * unc
    return (total, gmm, bgl, unc,
            jnp.mean(base), jnp.mean(gmm), jnp.mean(bgl), jnp.mean(unc))


def _check(output, target, **kwargs):
    losses = adaptive_gaussian_mm_loss(output, target, **kwargs)
    jax.block_until_ready(losses)
    (ref_total, ref_gmm, ref_bg, ref_unc,
     ref_mean_total, ref_mean_gmm, ref_mean_bg, ref_mean_unc) = _reference(output, target)
    assert jnp.allclose(losses["total_loss"], ref_total, rtol=1e-5, atol=1e-5)
    assert jnp.allclose(losses["gmm_loss"], ref_gmm, rtol=1e-5, atol=1e-5)
    assert jnp.allclose(losses["bg_loss"], ref_bg, rtol=1e-5, atol=1e-5)
    assert jnp.allclose(losses["uncertainty_loss"], ref_unc, rtol=1e-5, atol=1e-5)
    assert jnp.allclose(losses["mean_total_loss"], ref_mean_total, rtol=1e-5, atol=1e-5)
    assert jnp.allclose(losses["mean_gmm_loss"], ref_mean_gmm, rtol=1e-5, atol=1e-5)
    assert jnp.allclose(losses["mean_bg_loss"], ref_mean_bg, rtol=1e-5, atol=1e-5)
    assert jnp.allclose(losses["mean_uncertainty_loss"], ref_mean_unc, rtol=1e-5, atol=1e-5)


if __name__ == "__main__":
    key = jax.random.PRNGKey(0)
    k1, k2, k3, k4, k5, k6 = jax.random.split(key, 6)

    # --- main small test: B=2, 10 channels, 16x16 (128-multiple spatial) ---
    B, C, H, W = 2, 10, 16, 16
    output = jax.random.normal(k1, (B, C, H, W), dtype=jnp.float32)
    target = jax.random.normal(k2, (B, C, H, W), dtype=jnp.float32)
    det_target = (jax.random.uniform(k3, (B, 1, H, W)) > 0.9).astype(jnp.float32)
    target = target.at[:, 0:1].set(det_target)
    _check(output, target)

    # --- second test: non-128-multiple spatial + small block_elems to
    # exercise cdiv tiling with a masked partial edge block ---
    B2, H2, W2 = 3, 9, 20                       # HW = 180, tiles of 128 -> edge block
    output2 = jax.random.normal(k4, (B2, C, H2, W2), dtype=jnp.float32)
    target2 = jax.random.normal(k5, (B2, C, H2, W2), dtype=jnp.float32)
    det2 = (jax.random.uniform(k6, (B2, 1, H2, W2)) > 0.9).astype(jnp.float32)
    target2 = target2.at[:, 0:1].set(det2)
    _check(output2, target2, block_elems=128)

    print("KERNEL_OK")
</pallas_src>

<mosaic_0001>
module attributes {stable_mosaic.version = 11 : i64} {
  func.func @_loss_kernel(%arg0: i32, %arg1: i32, %arg2: memref<1x10x256xf32, #tpu.memory_space<vmem>>, %arg3: memref<1x10x256xf32, #tpu.memory_space<vmem>>, %arg4: memref<1x10x256xf32, #tpu.memory_space<vmem>>, %arg5: memref<1x3x128xf32, #tpu.memory_space<vmem>>) attributes {dimension_semantics = [#tpu.dimension_semantics<parallel>, #tpu.dimension_semantics<parallel>], iteration_bounds = array<i64: 2, 1>, scalar_prefetch = 0 : i64, scratch_operands = 0 : i64, tpu.core_type = #tpu.core_type<tc>, window_params = [{transform_indices = @transform_0, window_bounds = array<i64: 1, 10, 256>}, {transform_indices = @transform_1, window_bounds = array<i64: 1, 10, 256>}, {transform_indices = @transform_2, window_bounds = array<i64: 1, 10, 256>}, {transform_indices = @transform_3, window_bounds = array<i64: 1, 3, 128>}]} {
    %c0 = arith.constant 0 : index
    %c0_0 = arith.constant 0 : index
    %c0_1 = arith.constant 0 : index
    %0 = vector.load %arg2[%c0, %c0_0, %c0_1] : memref<1x10x256xf32, #tpu.memory_space<vmem>>, vector<1x1x256xf32>
    %c0_2 = arith.constant 0 : index
    %c0_3 = arith.constant 0 : index
    %c0_4 = arith.constant 0 : index
    %1 = vector.load %arg3[%c0_2, %c0_3, %c0_4] : memref<1x10x256xf32, #tpu.memory_space<vmem>>, vector<1x1x256xf32>
    %2 = math.absf %0 : vector<1x1x256xf32>
    %cst = arith.constant 0.000000e+00 : f32
    %3 = vector.broadcast %cst : f32 to vector<1x1x256xf32>
    %4 = arith.subf %3, %2 : vector<1x1x256xf32>
    %5 = math.exp %4 : vector<1x1x256xf32>
    %6 = math.log1p %5 : vector<1x1x256xf32>
    %cst_5 = arith.constant 0.000000e+00 : f32
    %7 = vector.broadcast %cst_5 : f32 to vector<1x1x256xf32>
    %8 = arith.minimumf %0, %7 : vector<1x1x256xf32>
    %9 = arith.subf %8, %6 : vector<1x1x256xf32>
    %cst_6 = arith.constant -1.000000e+02 : f32
    %10 = vector.broadcast %cst_6 : f32 to vector<1x1x256xf32>
    %11 = arith.maximumf %9, %10 : vector<1x1x256xf32>
    %cst_7 = arith.constant 0.000000e+00 : f32
    %12 = vector.broadcast %cst_7 : f32 to vector<1x1x256xf32>
    %13 = arith.maximumf %0, %12 : vector<1x1x256xf32>
    %cst_8 = arith.constant 0.000000e+00 : f32
    %14 = vector.broadcast %cst_8 : f32 to vector<1x1x256xf32>
    %15 = arith.subf %14, %13 : vector<1x1x256xf32>
    %16 = arith.subf %15, %6 : vector<1x1x256xf32>
    %cst_9 = arith.constant -1.000000e+02 : f32
    %17 = vector.broadcast %cst_9 : f32 to vector<1x1x256xf32>
    %18 = arith.maximumf %16, %17 : vector<1x1x256xf32>
    %19 = arith.mulf %1, %11 : vector<1x1x256xf32>
    %cst_10 = arith.constant 1.000000e+00 : f32
    %20 = vector.broadcast %cst_10 : f32 to vector<1x1x256xf32>
    %21 = arith.subf %20, %1 : vector<1x1x256xf32>
    %22 = arith.mulf %21, %18 : vector<1x1x256xf32>
    %23 = arith.addf %19, %22 : vector<1x1x256xf32>
    %cst_11 = arith.constant 0.000000e+00 : f32
    %24 = vector.broadcast %cst_11 : f32 to vector<1x1x256xf32>
    %25 = arith.subf %24, %23 : vector<1x1x256xf32>
    %cst_12 = arith.constant 5.000000e-01 : f32
    %26 = vector.broadcast %cst_12 : f32 to vector<1x1x256xf32>
    %27 = arith.cmpf ogt, %1, %26 : vector<1x1x256xf32>
    %28 = arith.extui %27 : vector<1x1x256xi1> to vector<1x1x256xi32>
    %29 = arith.sitofp %28 : vector<1x1x256xi32> to vector<1x1x256xf32>
    %c0_13 = arith.constant 0 : index
    %c1 = arith.constant 1 : index
    %c0_14 = arith.constant 0 : index
    %30 = vector.load %arg2[%c0_13, %c1, %c0_14] : memref<1x10x256xf32, #tpu.memory_space<vmem>>, vector<1x4x256xf32>
    %c0_15 = arith.constant 0 : index
    %c1_16 = arith.constant 1 : index
    %c0_17 = arith.constant 0 : index
    %31 = vector.load %arg3[%c0_15, %c1_16, %c0_17] : memref<1x10x256xf32, #tpu.memory_space<vmem>>, vector<1x4x256xf32>
    %c0_18 = arith.constant 0 : index
    %c5 = arith.constant 5 : index
    %c0_19 = arith.constant 0 : index
    %32 = vector.load %arg2[%c0_18, %c5, %c0_19] : memref<1x10x256xf32, #tpu.memory_space<vmem>>, vector<1x4x256xf32>
    %33 = math.exp %32 : vector<1x4x256xf32>
    %cst_20 = arith.constant 0.00999999977 : f32
    %cst_21 = arith.constant 1.000000e+01 : f32
    %34 = vector.broadcast %cst_20 : f32 to vector<1x4x256xf32>
    %35 = arith.maximumf %34, %33 : vector<1x4x256xf32>
    %36 = vector.broadcast %cst_21 : f32 to vector<1x4x256xf32>
    %37 = arith.minimumf %36, %35 : vector<1x4x256xf32>
    %38 = arith.subf %30, %31 : vector<1x4x256xf32>
    %cst_22 = arith.constant 9.99999997E-7 : f32
    %39 = vector.broadcast %cst_22 : f32 to vector<1x4x256xf32>
    %40 = arith.addf %37, %39 : vector<1x4x256xf32>
    %41 = arith.divf %38, %40 : vector<1x4x256xf32>
    %cst_23 = arith.constant 5.000000e-01 : f32
    %42 = vector.broadcast %cst_23 : f32 to vector<1x4x256xf32>
    %43 = arith.mulf %42, %41 : vector<1x4x256xf32>
    %44 = arith.mulf %43, %41 : vector<1x4x256xf32>
    %cst_24 = arith.constant 9.99999997E-7 : f32
    %45 = vector.broadcast %cst_24 : f32 to vector<1x4x256xf32>
    %46 = arith.addf %37, %45 : vector<1x4x256xf32>
    %47 = math.log %46 : vector<1x4x256xf32>
    %48 = arith.addf %44, %47 : vector<1x4x256xf32>
    %cst_25 = arith.constant 0.918938517 : f32
    %49 = vector.broadcast %cst_25 : f32 to vector<1x4x256xf32>
    %50 = arith.addf %48, %49 : vector<1x4x256xf32>
    %51 = vector.extract_strided_slice %50 {offsets = [0, 0, 0], sizes = [1, 1, 256], strides = [1, 1, 1]} : vector<1x4x256xf32> to vector<1x1x256xf32>
    %52 = vector.extract_strided_slice %50 {offsets = [0, 1, 0], sizes = [1, 1, 256], strides = [1, 1, 1]} : vector<1x4x256xf32> to vector<1x1x256xf32>
    %53 = arith.addf %51, %52 : vector<1x1x256xf32>
    %54 = vector.extract_strided_slice %50 {offsets = [0, 2, 0], sizes = [1, 1, 256], strides = [1, 1, 1]} : vector<1x4x256xf32> to vector<1x1x256xf32>
    %55 = arith.addf %53, %54 : vector<1x1x256xf32>
    %56 = vector.extract_strided_slice %50 {offsets = [0, 3, 0], sizes = [1, 1, 256], strides = [1, 1, 1]} : vector<1x4x256xf32> to vector<1x1x256xf32>
    %57 = arith.addf %55, %56 : vector<1x1x256xf32>
    %58 = arith.mulf %57, %29 : vector<1x1x256xf32>
    %59 = arith.addf %25, %58 : vector<1x1x256xf32>
    %c0_26 = arith.constant 0 : index
    %c9 = arith.constant 9 : index
    %c0_27 = arith.constant 0 : index
    %60 = vector.load %arg2[%c0_26, %c9, %c0_27] : memref<1x10x256xf32, #tpu.memory_space<vmem>>, vector<1x1x256xf32>
    %c0_28 = arith.constant 0 : index
    %c9_29 = arith.constant 9 : index
    %c0_30 = arith.constant 0 : index
    %61 = vector.load %arg3[%c0_28, %c9_29, %c0_30] : memref<1x10x256xf32, #tpu.memory_space<vmem>>, vector<1x1x256xf32>
    %62 = arith.subf %60, %61 : vector<1x1x256xf32>
    %63 = arith.mulf %62, %62 : vector<1x1x256xf32>
    %cst_31 = arith.constant 1.000000e+00 : f32
    %64 = vector.broadcast %cst_31 : f32 to vector<1x1x256xf32>
    %65 = arith.mulf %64, %59 : vector<1x1x256xf32>
    %cst_32 = arith.constant 1.000000e+00 : f32
    %66 = vector.broadcast %cst_32 : f32 to vector<1x1x256xf32>
    %67 = arith.mulf %66, %63 : vector<1x1x256xf32>
    %68 = arith.addf %65, %67 : vector<1x1x256xf32>
    %cst_33 = arith.constant 5.000000e-01 : f32
    %69 = vector.broadcast %cst_33 : f32 to vector<1x4x256xf32>
    %70 = arith.subf %37, %69 : vector<1x4x256xf32>
    %71 = arith.mulf %70, %70 : vector<1x4x256xf32>
    %cst_34 = arith.constant 1.000000e-01 : f32
    %72 = vector.broadcast %cst_34 : f32 to vector<1x4x256xf32>
    %73 = arith.mulf %72, %71 : vector<1x4x256xf32>
    %74 = vector.broadcast %68 : vector<1x1x256xf32> to vector<1x4x256xf32>
    %75 = arith.addf %74, %73 : vector<1x4x256xf32>
    %c0_35 = arith.constant 0 : index
    %c0_36 = arith.constant 0 : index
    %c0_37 = arith.constant 0 : index
    %76 = vector.load %arg4[%c0_35, %c0_36, %c0_37] : memref<1x10x256xf32, #tpu.memory_space<vmem>>, vector<1x4x256xf32>
    tpu.vector_store %arg4[%c0_35, %c0_36, %c0_37], %75 {strides = array<i32>} : memref<1x10x256xf32, #tpu.memory_space<vmem>>, vector<1x4x256xf32>,
    %c0_38 = arith.constant 0 : index
    %c4 = arith.constant 4 : index
    %c0_39 = arith.constant 0 : index
    %77 = vector.load %arg4[%c0_38, %c4, %c0_39] : memref<1x10x256xf32, #tpu.memory_space<vmem>>, vector<1x1x256xf32>
    tpu.vector_store %arg4[%c0_38, %c4, %c0_39], %59 {strides = array<i32>} : memref<1x10x256xf32, #tpu.memory_space<vmem>>, vector<1x1x256xf32>,
    %c0_40 = arith.constant 0 : index
    %c5_41 = arith.constant 5 : index
    %c0_42 = arith.constant 0 : index
    %78 = vector.load %arg4[%c0_40, %c5_41, %c0_42] : memref<1x10x256xf32, #tpu.memory_space<vmem>>, vector<1x1x256xf32>
    tpu.vector_store %arg4[%c0_40, %c5_41, %c0_42], %63 {strides = array<i32>} : memref<1x10x256xf32, #tpu.memory_space<vmem>>, vector<1x1x256xf32>,
    %c0_43 = arith.constant 0 : index
    %c6 = arith.constant 6 : index
    %c0_44 = arith.constant 0 : index
    %79 = vector.load %arg4[%c0_43, %c6, %c0_44] : memref<1x10x256xf32, #tpu.memory_space<vmem>>, vector<1x4x256xf32>
    tpu.vector_store %arg4[%c0_43, %c6, %c0_44], %71 {strides = array<i32>} : memref<1x10x256xf32, #tpu.memory_space<vmem>>, vector<1x4x256xf32>,
    %80 = vector.shape_cast %59 : vector<1x1x256xf32> to vector<1x1x1x256xf32>
    %cst_45 = arith.constant dense<0.000000e+00> : vector<1xf32>
    %81 = vector.multi_reduction <add>, %80, %cst_45 [1, 2, 3] : vector<1x1x1x256xf32> to vector<1xf32>
    %82 = vector.shape_cast %81 : vector<1xf32> to vector<1x1x1x1xf32>
    %83 = vector.extract %82[0, 0, 0, 0] : f32 from vector<1x1x1x1xf32>
    %84 = vector.shape_cast %63 : vector<1x1x256xf32> to vector<1x1x1x256xf32>
    %cst_46 = arith.constant dense<0.000000e+00> : vector<1xf32>
    %85 = vector.multi_reduction <add>, %84, %cst_46 [1, 2, 3] : vector<1x1x1x256xf32> to vector<1xf32>
    %86 = vector.shape_cast %85 : vector<1xf32> to vector<1x1x1x1xf32>
    %87 = vector.extract %86[0, 0, 0, 0] : f32 from vector<1x1x1x1xf32>
    %88 = vector.shape_cast %71 : vector<1x4x256xf32> to vector<1x1x4x256xf32>
    %cst_47 = arith.constant dense<0.000000e+00> : vector<1xf32>
    %89 = vector.multi_reduction <add>, %88, %cst_47 [1, 2, 3] : vector<1x1x4x256xf32> to vector<1xf32>
    %90 = vector.shape_cast %89 : vector<1xf32> to vector<1x1x1x1xf32>
    %91 = vector.extract %90[0, 0, 0, 0] : f32 from vector<1x1x1x1xf32>
    %92 = vector.broadcast %83 : f32 to vector<1x1x128xf32>
    %c0_48 = arith.constant 0 : index
    %c0_49 = arith.constant 0 : index
    %c0_50 = arith.constant 0 : index
    %93 = vector.load %arg5[%c0_48, %c0_49, %c0_50] : memref<1x3x128xf32, #tpu.memory_space<vmem>>, vector<1x1x128xf32>
    tpu.vector_store %arg5[%c0_48, %c0_49, %c0_50], %92 {strides = array<i32>} : memref<1x3x128xf32, #tpu.memory_space<vmem>>, vector<1x1x128xf32>,
    %94 = vector.broadcast %87 : f32 to vector<1x1x128xf32>
    %c0_51 = arith.constant 0 : index
    %c1_52 = arith.constant 1 : index
    %c0_53 = arith.constant 0 : index
    %95 = vector.load %arg5[%c0_51, %c1_52, %c0_53] : memref<1x3x128xf32, #tpu.memory_space<vmem>>, vector<1x1x128xf32>
    tpu.vector_store %arg5[%c0_51, %c1_52, %c0_53], %94 {strides = array<i32>} : memref<1x3x128xf32, #tpu.memory_space<vmem>>, vector<1x1x128xf32>,
    %96 = vector.broadcast %91 : f32 to vector<1x1x128xf32>
    %c0_54 = arith.constant 0 : index
    %c2 = arith.constant 2 : index
    %c0_55 = arith.constant 0 : index
    %97 = vector.load %arg5[%c0_54, %c2, %c0_55] : memref<1x3x128xf32, #tpu.memory_space<vmem>>, vector<1x1x128xf32>
    tpu.vector_store %arg5[%c0_54, %c2, %c0_55], %96 {strides = array<i32>} : memref<1x3x128xf32, #tpu.memory_space<vmem>>, vector<1x1x128xf32>,
    return
  }
  func.func @transform_0(%arg0: i32, %arg1: i32) -> (i32, i32, i32) {
    %c0_i32 = arith.constant 0 : i32
    %c0_i32_0 = arith.constant 0 : i32
    return %arg0, %c0_i32, %arg1 : i32, i32, i32
  }
  func.func @transform_1(%arg0: i32, %arg1: i32) -> (i32, i32, i32) {
    %c0_i32 = arith.constant 0 : i32
    %c0_i32_0 = arith.constant 0 : i32
    return %arg0, %c0_i32, %arg1 : i32, i32, i32
  }
  func.func @transform_2(%arg0: i32, %arg1: i32) -> (i32, i32, i32) {
    %c0_i32 = arith.constant 0 : i32
    %c0_i32_0 = arith.constant 0 : i32
    return %arg0, %c0_i32, %arg1 : i32, i32, i32
  }
  func.func @transform_3(%arg0: i32, %arg1: i32) -> (i32, i32, i32) {
    %c1_i32 = arith.constant 1 : i32
    %0 = arith.muli %arg0, %c1_i32 : i32
    %1 = arith.addi %0, %arg1 : i32
    %c0_i32 = arith.constant 0 : i32
    %c0_i32_0 = arith.constant 0 : i32
    %c0_i32_1 = arith.constant 0 : i32
    return %1, %c0_i32, %c0_i32_0 : i32, i32, i32
  }
}

</mosaic_0001>

<llo_original>
// kernel: tpu_custom_call.1
$region0: #{tpu_custom_call.1}
  #allocation0 [shape = 'u32[]', space=smem, size = 0x4, offset = 0x4, fixed_abs, tag = 'smem constant byte address 0x4 - core index']
  #allocation1 [shape = 'u32[144,128]{1,0:T(1,128)}', space=vmem, size = 0x12000, scoped, tag = 'internal scratch']
  %s0 = inlined_call_operand.vmem [shape: f32[2,10,256], index: 0, kind: input, shape index: {}]
  %s1 = inlined_call_operand.vmem [shape: f32[2,10,256], index: 1, kind: input, shape index: {}]
  %s2 = inlined_call_operand.vmem [shape: f32[2,10,256], index: 2, kind: output, shape index: {0}]
  %s3 = inlined_call_operand.vmem [shape: f32[2,3,128], index: 3, kind: output, shape index: {1}]
  %4 = xla_tuple %s2, %s3
  %s5 = sld [smem:[#allocation0]]
  $region49: #{tpu_custom_call.1} parent=0
    _
  %s7 = ssub.s32 1, %s5
  %s8 = scalar_select 0, %s7, %s5
  loop: start=0, step=1, limit=4
  $region2: #{tpu_custom_call.1} parent=0 // loop_pre_header
    _
  $region3: #{tpu_custom_call.1} parent=0 // loop_header
    %s10 = sphi 0, %s14
    %p11 = scmp.ge.s32.totalorder %s10, 4
    %s17 = sphi 0, %s29
    %s18 = sphi 0, %s25
    %s19 = sphi 0, %s17
    %s20 = sphi 0, %s18
    %s21 = sphi 0, %s19
    %s22 = sphi 0, %s20
    %s34 = sphi 0, %s36
    %s37 = sphi 0, %s34
    %s38 = sphi 0, %s37
    %s54 = sphi 0, %s38
    %s62 = sphi 0, %s64
    %s65 = sphi 0, %s62
    %s66 = sphi 0, %s65
    %s82 = sphi 0, %s66
    %s90 = sphi 0, %s92
    %s93 = sphi 0, %s90
    %s94 = sphi 0, %s93
    %s110 = sphi 0, %s94
    %s118 = sphi 0, %s120
    %s121 = sphi 0, %s118
    %s122 = sphi 0, %s121
    %s138 = sphi 0, %s122
  $region4: #{tpu_custom_call.1} parent=0 // loop_header_branch
    %13 = sbr.rel (%p11) target = $region8
  $region5: #{tpu_custom_call.1} parent=0 // loop_body
    %s15 = ssub.s32 %s10, 1
    %s16 = ssub.s32 %s10, 2
    %s23 = sadd.s32 1, %s18
    %p24 = scmp.ge.s32.totalorder %s23, 1
    %s25 = scalar_select %p24, 0, %s23
    %s26 = sadd.s32 1, %s17
    %s27 = scalar_select %p24, %s26, %s17
    %p28 = scmp.ge.s32.totalorder %s27, 2
    %s29 = scalar_select %p28, 0, %s27
    %s30 = ssub.s32 %s17, %s29
    %s31 = ssub.s32 %s18, %s25
    %s32 = sor.u32 %s30, %s31
    %p33 = scmp.eq.s32.totalorder %s32, 0
    %s35 = sadd.s32 %s34, 1
    %s36 = scalar_select %p33, %s34, %s35
    %p39 = pneg %p33
    %p40 = scmp.eq.s32.totalorder %s10, 1
    %p41 = por %p39, %p40
    %p42 = scmp.ne.s32.totalorder %s34, %s37
    %p43 = scmp.eq.s32.totalorder %s10, 0
    %p44 = por %p42, %p43
    %p45 = scmp.ne.s32.totalorder %s34, %s37
    %p46 = scmp.eq.s32.totalorder %s15, 1
    %p47 = por %p45, %p46
    %p48 = scmp.ne.s32.totalorder %s37, %s38
    %p49 = scmp.eq.s32.totalorder %s15, 0
    %p50 = por %p48, %p49
    %p51 = scmp.ne.s32.totalorder %s37, %s38
    %p52 = scmp.eq.s32.totalorder %s16, 1
    %p53 = por %p51, %p52
    %p55 = scmp.ne.s32.totalorder %s38, %s54
    %p56 = scmp.eq.s32.totalorder %s16, 0
    %p57 = por %p55, %p56
    %s58 = ssub.s32 %s17, %s29
    %s59 = ssub.s32 %s18, %s25
    %s60 = sor.u32 %s58, %s59
    %p61 = scmp.eq.s32.totalorder %s60, 0
    %s63 = sadd.s32 %s62, 1
    %s64 = scalar_select %p61, %s62, %s63
    %p67 = pneg %p61
    %p68 = scmp.eq.s32.totalorder %s10, 1
    %p69 = por %p67, %p68
    %p70 = scmp.ne.s32.totalorder %s62, %s65
    %p71 = scmp.eq.s32.totalorder %s10, 0
    %p72 = por %p70, %p71
    %p73 = scmp.ne.s32.totalorder %s62, %s65
    %p74 = scmp.eq.s32.totalorder %s15, 1
    %p75 = por %p73, %p74
    %p76 = scmp.ne.s32.totalorder %s65, %s66
    %p77 = scmp.eq.s32.totalorder %s15, 0
    %p78 = por %p76, %p77
    %p79 = scmp.ne.s32.totalorder %s65, %s66
    %p80 = scmp.eq.s32.totalorder %s16, 1
    %p81 = por %p79, %p80
    %p83 = scmp.ne.s32.totalorder %s66, %s82
    %p84 = scmp.eq.s32.totalorder %s16, 0
    %p85 = por %p83, %p84
    %s86 = ssub.s32 %s17, %s29
    %s87 = ssub.s32 %s18, %s25
    %s88 = sor.u32 %s86, %s87
    %p89 = scmp.eq.s32.totalorder %s88, 0
    %s91 = sadd.s32 %s90, 1
    %s92 = scalar_select %p89, %s90, %s91
    %p95 = pneg %p89
    %p96 = scmp.eq.s32.totalorder %s10, 1
    %p97 = por %p95, %p96
    %p98 = scmp.ne.s32.totalorder %s90, %s93
    %p99 = scmp.eq.s32.totalorder %s10, 0
    %p100 = por %p98, %p99
    %p101 = scmp.ne.s32.totalorder %s90, %s93
    %p102 = scmp.eq.s32.totalorder %s15, 1
    %p103 = por %p101, %p102
    %p104 = scmp.ne.s32.totalorder %s93, %s94
    %p105 = scmp.eq.s32.totalorder %s15, 0
    %p106 = por %p104, %p105
    %p107 = scmp.ne.s32.totalorder %s93, %s94
    %p108 = scmp.eq.s32.totalorder %s16, 1
    %p109 = por %p107, %p108
    %p111 = scmp.ne.s32.totalorder %s94, %s110
    %p112 = scmp.eq.s32.totalorder %s16, 0
    %p113 = por %p111, %p112
    %s114 = sadd.s32 %s17, %s18
    %s115 = sadd.s32 %s29, %s25
    %s116 = ssub.s32 %s114, %s115
    %p117 = scmp.eq.s32.totalorder %s116, 0
    %s119 = sadd.s32 %s118, 1
    %s120 = scalar_select %p117, %s118, %s119
    %p123 = pneg %p117
    %p124 = scmp.eq.s32.totalorder %s10, 1
    %p125 = por %p123, %p124
    %p126 = scmp.ne.s32.totalorder %s118, %s121
    %p127 = scmp.eq.s32.totalorder %s10, 0
    %p128 = por %p126, %p127
    %p129 = scmp.ne.s32.totalorder %s118, %s121
    %p130 = scmp.eq.s32.totalorder %s15, 1
    %p131 = por %p129, %p130
    %p132 = scmp.ne.s32.totalorder %s121, %s122
    %p133 = scmp.eq.s32.totalorder %s15, 0
    %p134 = por %p132, %p133
    %p135 = scmp.ne.s32.totalorder %s121, %s122
    %p136 = scmp.eq.s32.totalorder %s16, 1
    %p137 = por %p135, %p136
    %p139 = scmp.ne.s32.totalorder %s122, %s138
    %p140 = scmp.eq.s32.totalorder %s16, 0
    %p141 = por %p139, %p140
    %p142 = scmp.le.s32.totalorder 1, %s10
    %p143 = scmp.lt.s32.totalorder %s10, 3
    %p144 = pnand %p142, %p143
    %p145 = pneg %p144
    // Predicated region
    $region9: #{tpu_custom_call.1} parent=5 // pred_check
      _
    $region10: #{tpu_custom_call.1} parent=5 // pred_check_branch
      %147 = sbr.rel (%p144) target = $region12
    $region11: #{tpu_custom_call.1} parent=5 // pred_region
      %s148 = ssub.s32 %s10, 1
    $region12: #{tpu_custom_call.1} parent=5 // pred_fallthru
      _
    %p149 = scmp.lt.s32.totalorder %s10, 2
    // Predicated region
    $region13: #{tpu_custom_call.1} parent=5 // pred_check
      %p150 = pneg %p149
    $region14: #{tpu_custom_call.1} parent=5 // pred_check_branch
      %152 = sbr.rel (%p150) target = $region16
    $region15: #{tpu_custom_call.1} parent=5 // pred_region
      // Predicated region
      $region17: #{tpu_custom_call.1} parent=15 // pred_check
        %p153 = pneg %p44
      $region18: #{tpu_custom_call.1} parent=15 // pred_check_branch
        %155 = sbr.rel (%p153) target = $region20
      $region19: #{tpu_custom_call.1} parent=15 // pred_region
        %s156 = smul.u32 2, %s18
        %p157 = scmp.lt.s32.totalorder %s17, 1
        %s158 = scalar_select %p157, %s17, 1
        %p159 = scmp.lt.s32.totalorder %s156, 1
        %s160 = scalar_select %p159, %s156, 1
        %s161 = smul.addr %s158, 4
        %s162 = sadd.s32 %s160, %s161
        %s163 = smul.addr %s162, 8
        %s164 = scalar_lea.vmem %s0, %s163
        %s165 = smul.u32 2, %s18
      $region20: #{tpu_custom_call.1} parent=15 // pred_fallthru
        _
      // Predicated region
      $region21: #{tpu_custom_call.1} parent=15 // pred_check
        %p166 = pneg %p72
      $region22: #{tpu_custom_call.1} parent=15 // pred_check_branch
        %168 = sbr.rel (%p166) target = $region24
      $region23: #{tpu_custom_call.1} parent=15 // pred_region
        %s169 = smul.u32 2, %s18
        %p170 = scmp.lt.s32.totalorder %s17, 1
        %s171 = scalar_select %p170, %s17, 1
        %p172 = scmp.lt.s32.totalorder %s169, 1
        %s173 = scalar_select %p172, %s169, 1
        %s174 = smul.addr %s171, 4
        %s175 = sadd.s32 %s173, %s174
        %s176 = smul.addr %s175, 8
        %s177 = scalar_lea.vmem %s1, %s176
        %s178 = smul.u32 2, %s18
      $region24: #{tpu_custom_call.1} parent=15 // pred_fallthru
        _
    $region16: #{tpu_custom_call.1} parent=5 // pred_fallthru
      _
    %p179 = scmp.le.s32.totalorder 1, %s10
    %p180 = scmp.lt.s32.totalorder %s10, 3
    %p181 = pnand %p179, %p180
    %p182 = pneg %p181
    // Predicated region
    $region25: #{tpu_custom_call.1} parent=5 // pred_check
      _
    $region26: #{tpu_custom_call.1} parent=5 // pred_check_branch
      %184 = sbr.rel (%p181) target = $region28
    $region27: #{tpu_custom_call.1} parent=5 // pred_region
      %s185 = ssub.s32 %s10, 1
      %s186 = smul.u32 2, %s20
      %p187 = scmp.lt.s32.totalorder %s19, 1
      %s188 = scalar_select %p187, %s19, 1
      %p189 = scmp.lt.s32.totalorder %s186, 1
      %s190 = scalar_select %p189, %s186, 1
      %s191 = smul.addr %s188, 4
      %s192 = sadd.s32 %s190, %s191
      %s193 = smul.addr %s192, 8
      %s194 = scalar_lea.vmem %s0, %s193
      %p195 = pneg %p50
      %p196 = pneg %p47
      %s197 = smul.u32 2, %s20
      %p198 = scmp.lt.s32.totalorder %s19, 1
      %s199 = scalar_select %p198, %s19, 1
      %p200 = scmp.lt.s32.totalorder %s197, 1
      %s201 = scalar_select %p200, %s197, 1
      %s202 = smul.addr %s199, 4
      %s203 = sadd.s32 %s201, %s202
      %s204 = smul.addr %s203, 8
      %s205 = scalar_lea.vmem %s1, %s204
      %p206 = pneg %p78
      %p207 = pneg %p75
      %p208 = pneg %p106
      %p209 = pneg %p103
      %s210 = smul.u32 2, %s20
      %p211 = scmp.lt.s32.totalorder %s19, 1
      %s212 = scalar_select %p211, %s19, 1
      %p213 = scmp.lt.s32.totalorder %s210, 1
      %s214 = scalar_select %p213, %s210, 1
      %s215 = smul.addr %s212, 4
      %s216 = sadd.s32 %s214, %s215
      %s217 = smul.addr %s216, 8
      %s218 = scalar_lea.vmem %s2, %s217
      %p219 = pneg %p134
      %p220 = pneg %p131
      %s221 = sadd.s32 %s19, %s20
      %p222 = scmp.lt.s32.totalorder %s221, 1
      %s223 = scalar_select %p222, %s221, 1
      %s224 = smul.addr %s223, 4
      %s225 = scalar_lea.vmem %s3, %s224
      %s226 = smul.u32 2, %s20
      %p227 = scmp.lt.s32.totalorder %s19, 1
      %s228 = scalar_select %p227, %s19, 1
      %p229 = scmp.lt.s32.totalorder %s226, 1
      %s230 = scalar_select %p229, %s226, 1
      %s231 = smul.addr %s228, 4
      %s232 = sadd.s32 %s230, %s231
      %s233 = smul.addr %s232, 8
      %s234 = scalar_lea.vmem %s0, %s233
      %s235 = smul.u32 2, %s20
      %s236 = smul.u32 2, %s20
      %p237 = scmp.lt.s32.totalorder %s19, 1
      %s238 = scalar_select %p237, %s19, 1
      %p239 = scmp.lt.s32.totalorder %s236, 1
      %s240 = scalar_select %p239, %s236, 1
      %s241 = smul.addr %s238, 4
      %s242 = sadd.s32 %s240, %s241
      %s243 = smul.addr %s242, 8
      %s244 = scalar_lea.vmem %s1, %s243
      %s245 = smul.u32 2, %s20
      %s246 = smul.u32 2, %s20
      %p247 = scmp.lt.s32.totalorder %s19, 1
      %s248 = scalar_select %p247, %s19, 1
      %p249 = scmp.lt.s32.totalorder %s246, 1
      %s250 = scalar_select %p249, %s246, 1
      %s251 = smul.addr %s248, 4
      %s252 = sadd.s32 %s250, %s251
      %s253 = smul.addr %s252, 8
      %s254 = scalar_lea.vmem %s2, %s253
      %s255 = smul.u32 2, %s20
      %s256 = sadd.s32 %s19, %s20
      %p257 = scmp.lt.s32.totalorder %s256, 1
      %s258 = scalar_select %p257, %s256, 1
      %s259 = smul.addr %s258, 4
      %s260 = scalar_lea.vmem %s3, %s259
      %s261 = sadd.s32 %s19, %s20
      %v262 = vld [vmem:[%s234] ss:$8 sm:$0x3]
      %v263 = vld [vmem:[%s244] ss:$8 sm:$0x3]
      %v264 = vand.u32 2147483647, %v262
      %v265 = vsub.f32 0.0, %v264
      %v266 = vmul.f32 %v265, 1.442695
      %v267 = vpow.pop %v266
      %v268 = vadd.f32 %v267, 1.0
      %v269 = vlog2.pop %v268
      %v270 = vmul.f32 %v269, 0.6931472
      %v271 = vmul.f32 -0.5, %v267
      %v272 = vadd.f32 %v271, 1.0
      %v273 = vmul.f32 %v272, %v267
      %v274 = vand.u32 2147483647, %v267
      %vm275 = vcmp.lt.f32.partialorder %v274, 0.0004427343
      %v276 = vsel %vm275, %v273, %v270
      %v277 = vmin.f32 %v262, 0.0
      %v278 = vsub.f32 %v277, %v276
      %v279 = vmax.f32 %v278, -100.0
      %v280 = vmax.f32 %v262, 0.0
      %v281 = vsub.f32 0.0, %v280
      %v282 = vsub.f32 %v281, %v276
      %v283 = vmax.f32 %v282, -100.0
      %v284 = vmul.f32 %v263, %v279
      %v285 = vsub.f32 1.0, %v263
      %v286 = vmul.f32 %v285, %v283
      %v287 = vadd.f32 %v284, %v286
      %v288 = vsub.f32 0.0, %v287
      %vm289 = vcmp.gt.f32.partialorder %v263, 0.5
      %v290 = vsel %vm289, 1, 0
      %v291 = vcvt.s32.f32 %v290
      %v292 = vld [vmem:[%s234] sm:$0x1e]
      %v293 = vld [vmem:[%s234 + $0x8] sm:$0x1e]
      %v294 = vld [vmem:[%s244] sm:$0x1e]
      %v295 = vld [vmem:[%s244 + $0x8] sm:$0x1e]
      %v296 = vld [vmem:[%s234] sm:$0xe0]
      %v297 = vld [vmem:[%s234 + $0x8] sm:$0xe0]
      %v298 = vld [vmem:[%s234 + $0x10] sm:$0x1]
      %v299 = vld [vmem:[%s234 + $0x18] sm:$0x1]
      %v300 = vmul.f32 %v296, 1.442695
      %v301 = vpow.pop %v300
      %v302 = vmul.f32 %v297, 1.442695
      %v303 = vpow.pop %v302
      %v304 = vmul.f32 %v298, 1.442695
      %v305 = vpow.pop %v304
      %v306 = vmul.f32 %v299, 1.442695
      %v307 = vpow.pop %v306
      %v308 = vmax.f32 %v301, 0.01
      %v309 = vmax.f32 %v303, 0.01
      %v310 = vmax.f32 %v305, 0.01
      %v311 = vmax.f32 %v307, 0.01
      %v312 = vmin.f32 %v308, 10.0
      %v313 = vmin.f32 %v309, 10.0
      %v314 = vmin.f32 %v310, 10.0
      %v315 = vmin.f32 %v311, 10.0
      %v316 = vsub.f32 %v292, %v294
      %v317 = vsub.f32 %v293, %v295
      %v318 = vadd.f32 %v312, 1e-06
      %v319 = vadd.f32 %v313, 1e-06
      %v320 = vadd.f32 %v314, 1e-06
      %v321 = vadd.f32 %v315, 1e-06
      %vm326 = vcmask 1043456
      %v327 = vrot.slane %v318, 4
      %v328 = vrot.slane %v320, 4
      %v329 = vsel %vm326, %v327, %v328
      %v330 = vrot.slane %v319, 4
      %v331 = vrot.slane %v321, 4
      %v332 = vsel %vm326, %v330, %v331
      %v335 = vrcp.pop %v329
      %v336 = vmul.f32 %v316, %v335
      %v337 = vrcp.pop %v332
      %v338 = vmul.f32 %v317, %v337
      %v339 = vmul.f32 %v336, 0.5
      %v340 = vmul.f32 %v338, 0.5
      %v341 = vmul.f32 %v339, %v336
      %v342 = vmul.f32 %v340, %v338
      %v343 = vlog2.pop %v318
      %v344 = vmul.f32 %v343, 0.6931472
      %v345 = vlog2.pop %v319
      %v346 = vmul.f32 %v345, 0.6931472
      %v347 = vlog2.pop %v320
      %v348 = vmul.f32 %v347, 0.6931472
      %v349 = vlog2.pop %v321
      %v350 = vmul.f32 %v349, 0.6931472
      %v355 = vrot.slane %v344, 4
      %v356 = vrot.slane %v348, 4
      %v357 = vsel %vm326, %v355, %v356
      %v358 = vrot.slane %v346, 4
      %v359 = vrot.slane %v350, 4
      %v360 = vsel %vm326, %v358, %v359
      %v363 = vadd.f32 %v341, %v357
      %v364 = vadd.f32 %v342, %v360
      %v365 = vadd.f32 %v363, 0.9189385
      %v366 = vadd.f32 %v364, 0.9189385
      %v369 = vrot.slane %v365, 1
      %v370 = vrot.slane %v366, 1
      %v373 = vadd.f32 %v365, %v369
      %v374 = vadd.f32 %v366, %v370
      %v375 = vrot.slane %v365, 2
      %v376 = vrot.slane %v366, 2
      %v379 = vadd.f32 %v373, %v375
      %v380 = vadd.f32 %v374, %v376
      %v381 = vrot.slane %v365, 3
      %v382 = vrot.slane %v366, 3
      %v385 = vadd.f32 %v379, %v381
      %v386 = vadd.f32 %v380, %v382
      %v388 = vlaneseq
      %v389 = vshrl.u32 %v388, 7
      %v390 = vsub.s32 0, %v389
      %v391 = vrot.slane %v291, %v390
      %v392 = vlaneseq
      %v393 = vshrl.u32 %v392, 7
      %v394 = vsub.s32 1, %v393
      %v395 = vrot.slane %v291, %v394
      %v398 = vmul.f32 %v385, %v391
      %v399 = vmul.f32 %v386, %v395
      %v402 = vcombine.low %v398, %v399
      %v404 = vunpack.c.l.s4 1966171168
      %v405 = vunpack.c.0.s8 %v404
      %v406 = vlaneseq
      %v407 = vshrl.u32 %v406, 7
      %v408 = vsub.s32 %v405, %v407
      %v409 = vrot.slane %v402, %v408
      %v410 = vcombine.high %v409, %v409
      %v412 = vunpack.c.l.s4 1966171168
      %v413 = vunpack.c.0.s8 %v412
      %v414 = vlaneseq
      %v415 = vshrl.u32 %v414, 7
      %v416 = vsub.s32 %v413, %v415
      %v417 = vrot.slane %v410, %v416
      %v419 = vadd.f32 %v288, %v417
      %s420 = scalar_lea.vmem %s234, 17
      %v421 = vld [vmem:[%s420] ss:$8 sm:$0x3]
      %s422 = scalar_lea.vmem %s244, 17
      %v423 = vld [vmem:[%s422] ss:$8 sm:$0x3]
      %v424 = vsub.f32 %v421, %v423
      %v425 = vmul.f32 %v424, %v424
      %v426 = vadd.f32 %v419, %v425
      %v427 = vsub.f32 %v312, 0.5
      %v428 = vsub.f32 %v313, 0.5
      %v429 = vsub.f32 %v314, 0.5
      %v430 = vsub.f32 %v315, 0.5
      %v431 = vmul.f32 %v427, %v427
      %v432 = vmul.f32 %v428, %v428
      %v433 = vmul.f32 %v429, %v429
      %v434 = vmul.f32 %v430, %v430
      %v435 = vmul.f32 %v431, 0.1
      %v436 = vmul.f32 %v432, 0.1
      %v437 = vmul.f32 %v433, 0.1
      %v438 = vmul.f32 %v434, 0.1
      %v440 = vlaneseq
      %v441 = vshrl.u32 %v440, 7
      %v442 = vsub.s32 0, %v441
      %v443 = vrot.slane %v426, %v442
      %v444 = vlaneseq
      %v445 = vshrl.u32 %v444, 7
      %v446 = vsub.s32 1, %v445
      %v447 = vrot.slane %v426, %v446
      %v450 = vadd.f32 %v443, %v435
      %v451 = vadd.f32 %v447, %v436
      %v452 = vadd.f32 %v443, %v437
      %v453 = vadd.f32 %v447, %v438
      %vm458 = vcmask 1042432
      %v459 = vrot.slane %v450, 5
      %v460 = vrot.slane %v452, 5
      %v461 = vsel %vm458, %v459, %v460
      %v462 = vrot.slane %v451, 5
      %v463 = vrot.slane %v453, 5
      %v464 = vsel %vm458, %v462, %v463
      %467 = vst [vmem:[%s254] sm:$0xf] %v461
      %468 = vst [vmem:[%s254 + $0x8] sm:$0xf] %v464
      %v469 = vlaneseq
      %vm470 = vcmp.ge.s32.totalorder %v469, 0
      %vm471 = vcmp.lt.s32.totalorder %v469, 256
      %vm472 = vmand %vm470, %vm471
      %s473 = scalar_lea.vmem %s254, 4
      %474 = vst.msk [vmem:[%s473] ss:$8 sm:$0x3] %vm472, %v419
      %475 = vst.msk [vmem:[%s473] ss:$8 sm:$0x0] %vm472, %v419
      %s476 = scalar_lea.vmem %s254, 5
      %477 = vst.msk [vmem:[%s476] ss:$8 sm:$0x3] %vm472, %v425
      %478 = vst.msk [vmem:[%s476] ss:$8 sm:$0x0] %vm472, %v425
      %vm483 = vcmask 1040384
      %v484 = vrot.slane %v431, 7
      %v485 = vrot.slane %v432, 7
      %v486 = vrot.slane %v433, 7
      %v487 = vsel %vm483, %v484, %v486
      %v488 = vrot.slane %v434, 7
      %v489 = vsel %vm483, %v485, %v488
      %494 = vst [vmem:[%s254] sm:$0xc0] %v484
      %495 = vst [vmem:[%s254 + $0x8] sm:$0xc0] %v485
      %496 = vst [vmem:[%s254 + $0x10] sm:$0x3] %v487
      %497 = vst [vmem:[%s254 + $0x18] sm:$0x3] %v489
      %v499 = vlaneseq
      %v500 = vshrl.u32 %v499, 7
      %v501 = vsub.s32 0, %v500
      %v502 = vrot.slane %v419, %v501
      %v503 = vlaneseq
      %v504 = vshrl.u32 %v503, 7
      %v505 = vsub.s32 1, %v504
      %v506 = vrot.slane %v419, %v505
      %v509 = vsel %vm483, %v502, 0.0
      %v510 = vsel %vm483, %v506, 0.0
      %v511 = vadd.f32 %v509, %v510
      %512 = vadd.xlane.f32.xlu0 %v511
      %v513 = vpop.xlane.xlu0 %512
      %v514 = vrot.slane %v513, 4
      %v515 = vadd.f32 %v513, %v514
      %v516 = vrot.slane %v515, 2
      %v517 = vadd.f32 %v515, %v516
      %v518 = vrot.slane %v517, 1
      %v519 = vadd.f32 %v517, %v518
      %s520 = vtos %v519
      %v522 = vlaneseq
      %v523 = vshrl.u32 %v522, 7
      %v524 = vsub.s32 0, %v523
      %v525 = vrot.slane %v425, %v524
      %v526 = vlaneseq
      %v527 = vshrl.u32 %v526, 7
      %v528 = vsub.s32 1, %v527
      %v529 = vrot.slane %v425, %v528
      %v532 = vsel %vm483, %v525, 0.0
      %v533 = vsel %vm483, %v529, 0.0
      %v534 = vadd.f32 %v532, %v533
      %535 = vadd.xlane.f32.xlu0 %v534
      %v536 = vpop.xlane.xlu0 %535
      %v537 = vrot.slane %v536, 4
      %v538 = vadd.f32 %v536, %v537
      %v539 = vrot.slane %v538, 2
      %v540 = vadd.f32 %v538, %v539
      %v541 = vrot.slane %v540, 1
      %v542 = vadd.f32 %v540, %v541
      %s543 = vtos %v542
      %v544 = vrot.slane %v431, 5
      %v545 = vrot.slane %v433, 5
      %v546 = vsel %vm458, %v544, %v545
      %v547 = vrot.slane %v432, 5
      %v548 = vrot.slane %v434, 5
      %v549 = vsel %vm458, %v547, %v548
      %v552 = vsel %vm326, %v546, 0.0
      %v553 = vsel %vm326, %v549, 0.0
      %v554 = vadd.f32 %v552, %v553
      %555 = vadd.xlane.f32.xlu0 %v554
      %v556 = vpop.xlane.xlu0 %555
      %v557 = vrot.slane %v556, 4
      %v558 = vadd.f32 %v556, %v557
      %v559 = vrot.slane %v558, 2
      %v560 = vadd.f32 %v558, %v559
      %v561 = vrot.slane %v560, 1
      %v562 = vadd.f32 %v560, %v561
      %s563 = vtos %v562
      %v564 = vstv %s520
      %565 = vst [vmem:[%s260] sm:$0x1] %v564
      %v566 = vstv %s543
      %567 = vst [vmem:[%s260 + $0x1] sm:$0x1] %v566
      %v568 = vstv %s563
      %569 = vst [vmem:[%s260 + $0x2] sm:$0x1] %v568
      %s570 = smul.u32 2, %s20
      %p571 = scmp.lt.s32.totalorder %s19, 1
      %s572 = scalar_select %p571, %s19, 1
      %p573 = scmp.lt.s32.totalorder %s570, 1
      %s574 = scalar_select %p573, %s570, 1
      %s575 = smul.addr %s572, 4
      %s576 = sadd.s32 %s574, %s575
      %s577 = smul.addr %s576, 8
      %s578 = scalar_lea.vmem %s2, %s577
      %s579 = sadd.s32 %s19, %s20
      %p580 = scmp.lt.s32.totalorder %s579, 1
      %s581 = scalar_select %p580, %s579, 1
      %s582 = smul.addr %s581, 4
      %s583 = scalar_lea.vmem %s3, %s582
      // Predicated region
      $region29: #{tpu_custom_call.1} parent=27 // pred_check
        %p584 = pneg %p103
      $region30: #{tpu_custom_call.1} parent=27 // pred_check_branch
        %586 = sbr.rel (%p584) target = $region32
      $region31: #{tpu_custom_call.1} parent=27 // pred_region
        %s587 = smul.u32 2, %s20
      $region32: #{tpu_custom_call.1} parent=27 // pred_fallthru
        _
      // Predicated region
      $region33: #{tpu_custom_call.1} parent=27 // pred_check
        %p588 = pneg %p131
      $region34: #{tpu_custom_call.1} parent=27 // pred_check_branch
        %590 = sbr.rel (%p588) target = $region36
      $region35: #{tpu_custom_call.1} parent=27 // pred_region
        %s591 = sadd.s32 %s19, %s20
      $region36: #{tpu_custom_call.1} parent=27 // pred_fallthru
        _
    $region28: #{tpu_custom_call.1} parent=5 // pred_fallthru
      _
    %p592 = scmp.le.s32.totalorder 2, %s10
    // Predicated region
    $region37: #{tpu_custom_call.1} parent=5 // pred_check
      %p593 = pneg %p592
    $region38: #{tpu_custom_call.1} parent=5 // pred_check_branch
      %595 = sbr.rel (%p593) target = $region40
    $region39: #{tpu_custom_call.1} parent=5 // pred_region
      %s596 = ssub.s32 %s10, 2
      // Predicated region
      $region41: #{tpu_custom_call.1} parent=39 // pred_check
        %p597 = pneg %p109
      $region42: #{tpu_custom_call.1} parent=39 // pred_check_branch
        %599 = sbr.rel (%p597) target = $region44
      $region43: #{tpu_custom_call.1} parent=39 // pred_region
        %s600 = smul.u32 2, %s22
        %p601 = scmp.lt.s32.totalorder %s21, 1
        %s602 = scalar_select %p601, %s21, 1
        %p603 = scmp.lt.s32.totalorder %s600, 1
        %s604 = scalar_select %p603, %s600, 1
        %s605 = smul.addr %s602, 4
        %s606 = sadd.s32 %s604, %s605
        %s607 = smul.addr %s606, 8
        %s608 = scalar_lea.vmem %s2, %s607
      $region44: #{tpu_custom_call.1} parent=39 // pred_fallthru
        _
      // Predicated region
      $region45: #{tpu_custom_call.1} parent=39 // pred_check
        %p609 = pneg %p137
      $region46: #{tpu_custom_call.1} parent=39 // pred_check_branch
        %611 = sbr.rel (%p609) target = $region48
      $region47: #{tpu_custom_call.1} parent=39 // pred_region
        %s612 = sadd.s32 %s21, %s22
        %p613 = scmp.lt.s32.totalorder %s612, 1
        %s614 = scalar_select %p613, %s612, 1
        %s615 = smul.addr %s614, 4
        %s616 = scalar_lea.vmem %s3, %s615
      $region48: #{tpu_custom_call.1} parent=39 // pred_fallthru
        _
    $region40: #{tpu_custom_call.1} parent=5 // pred_fallthru
      _
  $region6: #{tpu_custom_call.1} parent=0 // loop_footer
    %s14 = sadd.s32 1, %s10
  $region7: #{tpu_custom_call.1} parent=0 // loop_footer_branch
    %9 = sbr.rel target = $region3
  $region8: #{tpu_custom_call.1} parent=0 // loop_exit
    _

</llo_original>
